<compile_context>
chip_gen: v5e
topology: v5e:2x2
jax: 0.10.0
libtpu: 0.0.40
codegen_flags: <defaults>
</compile_context>

<pallas_src>
import random

import jax
import jax.numpy as jnp
from jax.experimental import pallas as pl
from jax.experimental.pallas import tpu as pltpu

_LANE = 128
_ROW_ALIGN = 16      # keeps each half-tile sublane (8) aligned
_TILE_R = 2048       # 2048 x 128 x f32 = 1 MiB per block buffer


def _threefry2x32(k0, k1, x0, x1, n_blocks=3):
    """Threefry-2x32 with 4*n_blocks rounds. Only add/xor/rotate -> VPU-friendly."""
    ks = (k0, k1, k0 ^ k1 ^ jnp.uint32(0x1BD11BDA))
    rots = ((13, 15, 26, 6), (17, 29, 16, 24))
    x0 = x0 + ks[0]
    x1 = x1 + ks[1]
    for d in range(n_blocks):
        for r in rots[d % 2]:
            x0 = x0 + x1
            x1 = (x1 << r) | (x1 >> (32 - r))
            x1 = x1 ^ x0
        x0 = x0 + ks[(d + 1) % 3]
        x1 = x1 + ks[(d + 2) % 3] + jnp.uint32(d + 1)
    return x0, x1


def _additive_noise_kernel(seed_ref, scale_ref, x_ref, o_ref):
    # seed_ref:  SMEM (1,) int32   — base PRNG seed
    # scale_ref: SMEM (1,) float32 — randint(0,5) * noise_factor
    # x_ref/o_ref: VMEM (tile_r, 128) float32
    tile_r, lanes = x_ref.shape
    half = tile_r // 2

    # Globally-unique per-element counters (include program_id) so every tile
    # draws independent noise — required for correctness with a tiled grid.
    base = pl.program_id(0) * (half * lanes)
    row = jax.lax.broadcasted_iota(jnp.int32, (half, lanes), 0)
    col = jax.lax.broadcasted_iota(jnp.int32, (half, lanes), 1)
    cnt = (base + row * lanes + col).astype(jnp.uint32)

    k0 = seed_ref[0].astype(jnp.uint32)
    k1 = jnp.uint32(0x9E3779B9)
    c1 = jnp.full((half, lanes), 0x2545F491, dtype=jnp.uint32)
    b0, b1 = _threefry2x32(k0, k1, cnt, c1)

    inv24 = jnp.float32(1.0 / 16777216.0)
    # u1 in (0, 1] keeps log() finite; u2 in [0, 1).
    u1 = ((b0 >> 8).astype(jnp.int32).astype(jnp.float32) + 1.0) * inv24
    u2 = (b1 >> 8).astype(jnp.int32).astype(jnp.float32) * inv24

    s = scale_ref[0]                                 # hoisted SMEM read, folded below
    amp = jnp.sqrt(-2.0 * jnp.log(u1)) * s           # Box-Muller radius * scale
    c = jnp.cos((2.0 * jnp.pi) * u2)                 # z1 = r*cos(theta)
    sgn = jnp.where((b1 & 1) == 0, jnp.float32(1.0), jnp.float32(-1.0))
    z1 = amp * c
    # z2 = r*sin(theta): |sin| = sqrt(1-cos^2), sign(sin) independent of cos.
    z2 = amp * sgn * jnp.sqrt(jnp.maximum(1.0 - c * c, 0.0))

    # Both Box-Muller outputs used — one per half of the tile.
    o_ref[:half, :] = x_ref[:half, :] + z1
    o_ref[half:, :] = x_ref[half:, :] + z2


def additive_noise(img, noise_factor, *, seed, randint_val):
    """img: float array (any shape, e.g. NCHW). Returns img + N(0,1)*k*noise_factor."""
    orig_shape = img.shape
    orig_dtype = img.dtype
    x = img if orig_dtype == jnp.float32 else img.astype(jnp.float32)
    flat = x.reshape(-1)
    n = flat.shape[0]

    rows_needed = pl.cdiv(n, _LANE)
    if rows_needed <= _TILE_R:
        # Single tile covering the whole (small) input.
        tile_r = max(_ROW_ALIGN,
                     ((rows_needed + _ROW_ALIGN - 1) // _ROW_ALIGN) * _ROW_ALIGN)
        rows = tile_r
    else:
        tile_r = _TILE_R
        rows = ((rows_needed + tile_r - 1) // tile_r) * tile_r

    n_pad = rows * _LANE
    if n_pad != n:                       # common NCHW sizes skip this copy entirely
        flat = jnp.pad(flat, (0, n_pad - n))
    x2d = flat.reshape(rows, _LANE)

    seed_arr = jnp.array([seed], dtype=jnp.int32)
    scale_arr = jnp.array([float(randint_val) * float(noise_factor)], dtype=jnp.float32)

    out2d = pl.pallas_call(
        _additive_noise_kernel,
        out_shape=jax.ShapeDtypeStruct((rows, _LANE), jnp.float32),
        grid=(rows // tile_r,),
        in_specs=[
            pl.BlockSpec(memory_space=pltpu.SMEM),             # seed
            pl.BlockSpec(memory_space=pltpu.SMEM),             # scale
            pl.BlockSpec((tile_r, _LANE), lambda i: (i, 0)),   # image tile
        ],
        out_specs=pl.BlockSpec((tile_r, _LANE), lambda i: (i, 0)),
        compiler_params=pltpu.CompilerParams(
            dimension_semantics=("parallel",)),                # 2 TCs on v7x
    )(seed_arr, scale_arr, x2d)

    out = out2d.reshape(-1)
    if n_pad != n:
        out = out[:n]
    out = out.reshape(orig_shape)
    if orig_dtype != jnp.float32:
        out = out.astype(orig_dtype)
    return out


if __name__ == "__main__":
    noise_factor = 0.1

    # Deterministic input (NCHW, like the PyTorch module's img).
    key = jax.random.PRNGKey(0)
    img = jax.random.normal(key, (2, 4, 16, 16), dtype=jnp.float32)

    # torch's host-side `random.randint(0, 5)` draw, made deterministic here.
    k = random.Random(0).randint(0, 5)

    out = additive_noise(img, noise_factor, seed=1234, randint_val=k)
    out = jax.block_until_ready(out)

    assert out.shape == img.shape and out.dtype == img.dtype
    assert bool(jnp.all(jnp.isfinite(out)))
    # Sanity: noise magnitude should scale with k * noise_factor.
    if k > 0:
        assert float(jnp.std(out - img)) > 0.0
    print("KERNEL_OK")
</pallas_src>

<mosaic_0001>
module attributes {stable_mosaic.version = 11 : i64} {
  func.func @_additive_noise_kernel(%arg0: i32, %arg1: memref<1xi32, #tpu.memory_space<smem>>, %arg2: memref<1xf32, #tpu.memory_space<smem>>, %arg3: memref<16x128xf32, #tpu.memory_space<vmem>>, %arg4: memref<16x128xf32, #tpu.memory_space<vmem>>) attributes {dimension_semantics = [#tpu.dimension_semantics<parallel>], iteration_bounds = array<i64: 1>, scalar_prefetch = 0 : i64, scratch_operands = 0 : i64, tpu.core_type = #tpu.core_type<tc>, window_params = [{transform_indices = @transform_0, window_bounds = array<i64: 1>}, {transform_indices = @transform_1, window_bounds = array<i64: 1>}, {transform_indices = @transform_2, window_bounds = array<i64: 16, 128>}, {transform_indices = @transform_3, window_bounds = array<i64: 16, 128>}]} {
    %c1024_i32 = arith.constant 1024 : i32
    %0 = arith.muli %arg0, %c1024_i32 : i32
    %1 = tpu.iota {dimensions = array<i32: 0>} : vector<8x128xi32>
    %2 = tpu.iota {dimensions = array<i32: 1>} : vector<8x128xi32>
    %c128_i32 = arith.constant 128 : i32
    %3 = vector.broadcast %c128_i32 : i32 to vector<8x128xi32>
    %4 = arith.muli %1, %3 : vector<8x128xi32>
    %5 = vector.broadcast %0 : i32 to vector<8x128xi32>
    %6 = arith.addi %5, %4 : vector<8x128xi32>
    %7 = arith.addi %6, %2 : vector<8x128xi32>
    %c0 = arith.constant 0 : index
    %8 = memref.load %arg1[%c0] : memref<1xi32, #tpu.memory_space<smem>>
    %c625341585_i32 = arith.constant 625341585 : i32
    %9 = vector.broadcast %c625341585_i32 : i32 to vector<8x128xi32>
    %c-1640531527_i32 = arith.constant -1640531527 : i32
    %10 = arith.xori %8, %c-1640531527_i32 : i32
    %c466688986_i32 = arith.constant 466688986 : i32
    %11 = arith.xori %10, %c466688986_i32 : i32
    %12 = vector.broadcast %8 : i32 to vector<8x128xi32>
    %13 = arith.addi %7, %12 : vector<8x128xi32>
    %c-1640531527_i32_0 = arith.constant -1640531527 : i32
    %14 = vector.broadcast %c-1640531527_i32_0 : i32 to vector<8x128xi32>
    %15 = arith.addi %9, %14 : vector<8x128xi32>
    %16 = arith.addi %13, %15 : vector<8x128xi32>
    %c13_i32 = arith.constant 13 : i32
    %17 = vector.broadcast %c13_i32 : i32 to vector<8x128xi32>
    %18 = arith.shli %15, %17 : vector<8x128xi32>
    %c19_i32 = arith.constant 19 : i32
    %19 = vector.broadcast %c19_i32 : i32 to vector<8x128xi32>
    %20 = arith.shrui %15, %19 : vector<8x128xi32>
    %21 = arith.ori %18, %20 : vector<8x128xi32>
    %22 = arith.xori %21, %16 : vector<8x128xi32>
    %23 = arith.addi %16, %22 : vector<8x128xi32>
    %c15_i32 = arith.constant 15 : i32
    %24 = vector.broadcast %c15_i32 : i32 to vector<8x128xi32>
    %25 = arith.shli %22, %24 : vector<8x128xi32>
    %c17_i32 = arith.constant 17 : i32
    %26 = vector.broadcast %c17_i32 : i32 to vector<8x128xi32>
    %27 = arith.shrui %22, %26 : vector<8x128xi32>
    %28 = arith.ori %25, %27 : vector<8x128xi32>
    %29 = arith.xori %28, %23 : vector<8x128xi32>
    %30 = arith.addi %23, %29 : vector<8x128xi32>
    %c26_i32 = arith.constant 26 : i32
    %31 = vector.broadcast %c26_i32 : i32 to vector<8x128xi32>
    %32 = arith.shli %29, %31 : vector<8x128xi32>
    %c6_i32 = arith.constant 6 : i32
    %33 = vector.broadcast %c6_i32 : i32 to vector<8x128xi32>
    %34 = arith.shrui %29, %33 : vector<8x128xi32>
    %35 = arith.ori %32, %34 : vector<8x128xi32>
    %36 = arith.xori %35, %30 : vector<8x128xi32>
    %37 = arith.addi %30, %36 : vector<8x128xi32>
    %c6_i32_1 = arith.constant 6 : i32
    %38 = vector.broadcast %c6_i32_1 : i32 to vector<8x128xi32>
    %39 = arith.shli %36, %38 : vector<8x128xi32>
    %c26_i32_2 = arith.constant 26 : i32
    %40 = vector.broadcast %c26_i32_2 : i32 to vector<8x128xi32>
    %41 = arith.shrui %36, %40 : vector<8x128xi32>
    %42 = arith.ori %39, %41 : vector<8x128xi32>
    %43 = arith.xori %42, %37 : vector<8x128xi32>
    %c-1640531527_i32_3 = arith.constant -1640531527 : i32
    %44 = vector.broadcast %c-1640531527_i32_3 : i32 to vector<8x128xi32>
    %45 = arith.addi %37, %44 : vector<8x128xi32>
    %46 = vector.broadcast %11 : i32 to vector<8x128xi32>
    %47 = arith.addi %43, %46 : vector<8x128xi32>
    %c1_i32 = arith.constant 1 : i32
    %48 = vector.broadcast %c1_i32 : i32 to vector<8x128xi32>
    %49 = arith.addi %47, %48 : vector<8x128xi32>
    %50 = arith.addi %45, %49 : vector<8x128xi32>
    %c17_i32_4 = arith.constant 17 : i32
    %51 = vector.broadcast %c17_i32_4 : i32 to vector<8x128xi32>
    %52 = arith.shli %49, %51 : vector<8x128xi32>
    %c15_i32_5 = arith.constant 15 : i32
    %53 = vector.broadcast %c15_i32_5 : i32 to vector<8x128xi32>
    %54 = arith.shrui %49, %53 : vector<8x128xi32>
    %55 = arith.ori %52, %54 : vector<8x128xi32>
    %56 = arith.xori %55, %50 : vector<8x128xi32>
    %57 = arith.addi %50, %56 : vector<8x128xi32>
    %c29_i32 = arith.constant 29 : i32
    %58 = vector.broadcast %c29_i32 : i32 to vector<8x128xi32>
    %59 = arith.shli %56, %58 : vector<8x128xi32>
    %c3_i32 = arith.constant 3 : i32
    %60 = vector.broadcast %c3_i32 : i32 to vector<8x128xi32>
    %61 = arith.shrui %56, %60 : vector<8x128xi32>
    %62 = arith.ori %59, %61 : vector<8x128xi32>
    %63 = arith.xori %62, %57 : vector<8x128xi32>
    %64 = arith.addi %57, %63 : vector<8x128xi32>
    %c16_i32 = arith.constant 16 : i32
    %65 = vector.broadcast %c16_i32 : i32 to vector<8x128xi32>
    %66 = arith.shli %63, %65 : vector<8x128xi32>
    %c16_i32_6 = arith.constant 16 : i32
    %67 = vector.broadcast %c16_i32_6 : i32 to vector<8x128xi32>
    %68 = arith.shrui %63, %67 : vector<8x128xi32>
    %69 = arith.ori %66, %68 : vector<8x128xi32>
    %70 = arith.xori %69, %64 : vector<8x128xi32>
    %71 = arith.addi %64, %70 : vector<8x128xi32>
    %c24_i32 = arith.constant 24 : i32
    %72 = vector.broadcast %c24_i32 : i32 to vector<8x128xi32>
    %73 = arith.shli %70, %72 : vector<8x128xi32>
    %c8_i32 = arith.constant 8 : i32
    %74 = vector.broadcast %c8_i32 : i32 to vector<8x128xi32>
    %75 = arith.shrui %70, %74 : vector<8x128xi32>
    %76 = arith.ori %73, %75 : vector<8x128xi32>
    %77 = arith.xori %76, %71 : vector<8x128xi32>
    %78 = vector.broadcast %11 : i32 to vector<8x128xi32>
    %79 = arith.addi %71, %78 : vector<8x128xi32>
    %80 = vector.broadcast %8 : i32 to vector<8x128xi32>
    %81 = arith.addi %77, %80 : vector<8x128xi32>
    %c2_i32 = arith.constant 2 : i32
    %82 = vector.broadcast %c2_i32 : i32 to vector<8x128xi32>
    %83 = arith.addi %81, %82 : vector<8x128xi32>
    %84 = arith.addi %79, %83 : vector<8x128xi32>
    %c13_i32_7 = arith.constant 13 : i32
    %85 = vector.broadcast %c13_i32_7 : i32 to vector<8x128xi32>
    %86 = arith.shli %83, %85 : vector<8x128xi32>
    %c19_i32_8 = arith.constant 19 : i32
    %87 = vector.broadcast %c19_i32_8 : i32 to vector<8x128xi32>
    %88 = arith.shrui %83, %87 : vector<8x128xi32>
    %89 = arith.ori %86, %88 : vector<8x128xi32>
    %90 = arith.xori %89, %84 : vector<8x128xi32>
    %91 = arith.addi %84, %90 : vector<8x128xi32>
    %c15_i32_9 = arith.constant 15 : i32
    %92 = vector.broadcast %c15_i32_9 : i32 to vector<8x128xi32>
    %93 = arith.shli %90, %92 : vector<8x128xi32>
    %c17_i32_10 = arith.constant 17 : i32
    %94 = vector.broadcast %c17_i32_10 : i32 to vector<8x128xi32>
    %95 = arith.shrui %90, %94 : vector<8x128xi32>
    %96 = arith.ori %93, %95 : vector<8x128xi32>
    %97 = arith.xori %96, %91 : vector<8x128xi32>
    %98 = arith.addi %91, %97 : vector<8x128xi32>
    %c26_i32_11 = arith.constant 26 : i32
    %99 = vector.broadcast %c26_i32_11 : i32 to vector<8x128xi32>
    %100 = arith.shli %97, %99 : vector<8x128xi32>
    %c6_i32_12 = arith.constant 6 : i32
    %101 = vector.broadcast %c6_i32_12 : i32 to vector<8x128xi32>
    %102 = arith.shrui %97, %101 : vector<8x128xi32>
    %103 = arith.ori %100, %102 : vector<8x128xi32>
    %104 = arith.xori %103, %98 : vector<8x128xi32>
    %105 = arith.addi %98, %104 : vector<8x128xi32>
    %c6_i32_13 = arith.constant 6 : i32
    %106 = vector.broadcast %c6_i32_13 : i32 to vector<8x128xi32>
    %107 = arith.shli %104, %106 : vector<8x128xi32>
    %c26_i32_14 = arith.constant 26 : i32
    %108 = vector.broadcast %c26_i32_14 : i32 to vector<8x128xi32>
    %109 = arith.shrui %104, %108 : vector<8x128xi32>
    %110 = arith.ori %107, %109 : vector<8x128xi32>
    %111 = arith.xori %110, %105 : vector<8x128xi32>
    %112 = vector.broadcast %8 : i32 to vector<8x128xi32>
    %113 = arith.addi %105, %112 : vector<8x128xi32>
    %c-1640531527_i32_15 = arith.constant -1640531527 : i32
    %114 = vector.broadcast %c-1640531527_i32_15 : i32 to vector<8x128xi32>
    %115 = arith.addi %111, %114 : vector<8x128xi32>
    %c3_i32_16 = arith.constant 3 : i32
    %116 = vector.broadcast %c3_i32_16 : i32 to vector<8x128xi32>
    %117 = arith.addi %115, %116 : vector<8x128xi32>
    %c8_i32_17 = arith.constant 8 : i32
    %118 = vector.broadcast %c8_i32_17 : i32 to vector<8x128xi32>
    %119 = arith.shrui %113, %118 : vector<8x128xi32>
    %120 = arith.sitofp %119 : vector<8x128xi32> to vector<8x128xf32>
    %cst = arith.constant 1.000000e+00 : f32
    %121 = vector.broadcast %cst : f32 to vector<8x128xf32>
    %122 = arith.addf %120, %121 : vector<8x128xf32>
    %cst_18 = arith.constant 5.96046448E-8 : f32
    %123 = vector.broadcast %cst_18 : f32 to vector<8x128xf32>
    %124 = arith.mulf %122, %123 : vector<8x128xf32>
    %c8_i32_19 = arith.constant 8 : i32
    %125 = vector.broadcast %c8_i32_19 : i32 to vector<8x128xi32>
    %126 = arith.shrui %117, %125 : vector<8x128xi32>
    %127 = arith.sitofp %126 : vector<8x128xi32> to vector<8x128xf32>
    %cst_20 = arith.constant 5.96046448E-8 : f32
    %128 = vector.broadcast %cst_20 : f32 to vector<8x128xf32>
    %129 = arith.mulf %127, %128 : vector<8x128xf32>
    %c0_21 = arith.constant 0 : index
    %130 = memref.load %arg2[%c0_21] : memref<1xf32, #tpu.memory_space<smem>>
    %131 = math.log %124 : vector<8x128xf32>
    %cst_22 = arith.constant -2.000000e+00 : f32
    %132 = vector.broadcast %cst_22 : f32 to vector<8x128xf32>
    %133 = arith.mulf %132, %131 : vector<8x128xf32>
    %134 = math.sqrt %133 : vector<8x128xf32>
    %135 = vector.broadcast %130 : f32 to vector<8x128xf32>
    %136 = arith.mulf %134, %135 : vector<8x128xf32>
    %cst_23 = arith.constant 6.28318548 : f32
    %137 = vector.broadcast %cst_23 : f32 to vector<8x128xf32>
    %138 = arith.mulf %137, %129 : vector<8x128xf32>
    %139 = math.cos %138 : vector<8x128xf32>
    %c1_i32_24 = arith.constant 1 : i32
    %140 = vector.broadcast %c1_i32_24 : i32 to vector<8x128xi32>
    %141 = arith.andi %117, %140 : vector<8x128xi32>
    %c0_i32 = arith.constant 0 : i32
    %142 = vector.broadcast %c0_i32 : i32 to vector<8x128xi32>
    %143 = arith.cmpi eq, %141, %142 : vector<8x128xi32>
    %cst_25 = arith.constant 1.000000e+00 : f32
    %cst_26 = arith.constant -1.000000e+00 : f32
    %144 = vector.broadcast %cst_25 : f32 to vector<8x128xf32>
    %145 = vector.broadcast %cst_26 : f32 to vector<8x128xf32>
    %146 = arith.select %143, %144, %145 : vector<8x128xi1>, vector<8x128xf32>
    %147 = arith.mulf %136, %139 : vector<8x128xf32>
    %148 = arith.mulf %136, %146 : vector<8x128xf32>
    %149 = arith.mulf %139, %139 : vector<8x128xf32>
    %cst_27 = arith.constant 1.000000e+00 : f32
    %150 = vector.broadcast %cst_27 : f32 to vector<8x128xf32>
    %151 = arith.subf %150, %149 : vector<8x128xf32>
    %cst_28 = arith.constant 0.000000e+00 : f32
    %152 = vector.broadcast %cst_28 : f32 to vector<8x128xf32>
    %153 = arith.maximumf %151, %152 : vector<8x128xf32>
    %154 = math.sqrt %153 : vector<8x128xf32>
    %155 = arith.mulf %148, %154 : vector<8x128xf32>
    %c0_29 = arith.constant 0 : index
    %c0_30 = arith.constant 0 : index
    %156 = vector.load %arg3[%c0_29, %c0_30] : memref<16x128xf32, #tpu.memory_space<vmem>>, vector<8x128xf32>
    %157 = arith.addf %156, %147 : vector<8x128xf32>
    %c0_31 = arith.constant 0 : index
    %c0_32 = arith.constant 0 : index
    %158 = vector.load %arg4[%c0_31, %c0_32] : memref<16x128xf32, #tpu.memory_space<vmem>>, vector<8x128xf32>
    tpu.vector_store %arg4[%c0_31, %c0_32], %157 {strides = array<i32>} : memref<16x128xf32, #tpu.memory_space<vmem>>, vector<8x128xf32>,
    %c8 = arith.constant 8 : index
    %c0_33 = arith.constant 0 : index
    %159 = vector.load %arg3[%c8, %c0_33] : memref<16x128xf32, #tpu.memory_space<vmem>>, vector<8x128xf32>
    %160 = arith.addf %159, %155 : vector<8x128xf32>
    %c8_34 = arith.constant 8 : index
    %c0_35 = arith.constant 0 : index
    %161 = vector.load %arg4[%c8_34, %c0_35] : memref<16x128xf32, #tpu.memory_space<vmem>>, vector<8x128xf32>
    tpu.vector_store %arg4[%c8_34, %c0_35], %160 {strides = array<i32>} : memref<16x128xf32, #tpu.memory_space<vmem>>, vector<8x128xf32>,
    return
  }
  func.func @transform_0(%arg0: i32) -> i32 {
    %c0_i32 = arith.constant 0 : i32
    %c0_i32_0 = arith.constant 0 : i32
    return %c0_i32 : i32
  }
  func.func @transform_1(%arg0: i32) -> i32 {
    %c0_i32 = arith.constant 0 : i32
    %c0_i32_0 = arith.constant 0 : i32
    return %c0_i32 : i32
  }
  func.func @transform_2(%arg0: i32) -> (i32, i32) {
    %c0_i32 = arith.constant 0 : i32
    %c0_i32_0 = arith.constant 0 : i32
    return %arg0, %c0_i32 : i32, i32
  }
  func.func @transform_3(%arg0: i32) -> (i32, i32) {
    %c0_i32 = arith.constant 0 : i32
    %c0_i32_0 = arith.constant 0 : i32
    return %arg0, %c0_i32 : i32, i32
  }
}

</mosaic_0001>

<llo_original>
// kernel: tpu_custom_call.1
$region0: #{tpu_custom_call.1}
  #allocation0 [shape = 'u32[]', space=smem, size = 0x4, offset = 0x4, fixed_abs, tag = 'smem constant byte address 0x4 - core index']
  #allocation1 [shape = 'u32[72,128]{1,0:T(1,128)}', space=vmem, size = 0x9000, scoped, tag = 'internal scratch']
  #allocation2 [shape = 's32[1]{0:T(128)S(6)}', space=smem, size = 0x200, scoped, tag = 'scoped memory for tpu_custom_call.1']
  #allocation3 [shape = 'f32[1]{0:T(128)S(6)}', space=smem, size = 0x200, scoped, tag = 'scoped memory for tpu_custom_call.1']
  %s0 = inlined_call_operand.<no memory space> [shape: s32[1], index: 0, kind: input, shape index: {}]
  %s1 = inlined_call_operand.<no memory space> [shape: f32[1], index: 1, kind: input, shape index: {}]
  %s2 = inlined_call_operand.hbm [shape: f32[16,128], index: 2, kind: input, shape index: {}]
  %s3 = inlined_call_operand.hbm [shape: f32[16,128], index: 3, kind: output, shape index: {}]
  %s4 = sld [smem:[#allocation0]]
  $region26: #{tpu_custom_call.1} parent=0
    _
  %s6 = ssub.s32 1, %s4
  %s7 = scalar_select 0, %s6, %s4
  %8 = sst [smem:[#allocation2]] %s0
  %9 = sst [smem:[#allocation3]] %s1
  $region1: #{tpu_custom_call.1} parent=0
    #allocation4 [shape = 'u8[8192]{0}', space=vmem, size = 0x2000, scoped, tag = 'input window, operand 2, single buffered']
    #allocation5 [shape = 's32[1]{0}', space=sflag, size = 0x4, scoped, tag = 'scoped memory for tpu_custom_call.1']
    #allocation6 [shape = 's32[1]{0}', space=sflag, size = 0x4, scoped, tag = 'scoped memory for tpu_custom_call.1']
    #allocation7 [shape = 'u8[8192]{0}', space=vmem, size = 0x2000, scoped, tag = 'output window, operand 0, single buffered']
    %10 = vsyncpa [#allocation5], 0
    %11 = vsyncpa [#allocation6], 0
    // Predicated region
    $region2: #{tpu_custom_call.1} parent=1 // pred_check
      _
    $region3: #{tpu_custom_call.1} parent=1 // pred_check_branch
      %13 = sbr.rel (0) target = $region5
    $region4: #{tpu_custom_call.1} parent=1 // pred_region
      _
    $region5: #{tpu_custom_call.1} parent=1 // pred_fallthru
      _
    // Predicated region
    $region6: #{tpu_custom_call.1} parent=1 // pred_check
      _
    $region7: #{tpu_custom_call.1} parent=1 // pred_check_branch
      %15 = sbr.rel (0) target = $region9
    $region8: #{tpu_custom_call.1} parent=1 // pred_region
      _
    $region9: #{tpu_custom_call.1} parent=1 // pred_fallthru
      _
    // Predicated region
    $region10: #{tpu_custom_call.1} parent=1 // pred_check
      _
    $region11: #{tpu_custom_call.1} parent=1 // pred_check_branch
      %17 = sbr.rel (0) target = $region13
    $region12: #{tpu_custom_call.1} parent=1 // pred_region
      %19 = vsyncadd [#allocation5], 0
      %s20 = sshll.u32 %s2, 4
      %s21 = int_to_ptr.hbm [resolvable:$true] %s20
      %s22 = sshll.u32 [#allocation4], 4
      %s23 = int_to_ptr.vmem [resolvable:$true] %s22
      %28 = dma.hbm_to_vmem [thread:$0]  %s21, 256, %s23, [#allocation5], 128, 128, 8
    $region13: #{tpu_custom_call.1} parent=1 // pred_fallthru
      _
    // Predicated region
    $region14: #{tpu_custom_call.1} parent=1 // pred_check
      _
    $region15: #{tpu_custom_call.1} parent=1 // pred_check_branch
      %30 = sbr.rel (0) target = $region17
    $region16: #{tpu_custom_call.1} parent=1 // pred_region
      %32 = dma.done [#allocation5], 256
    $region17: #{tpu_custom_call.1} parent=1 // pred_fallthru
      _
    %s33 = smul.u32 0, 1024
    %v34 = vlaneseq
    %v35 = vshrl.u32 %v34, 7
    %v36 = vlaneseq
    %v37 = vand.u32 %v36, 127
    %v38 = vmul.u32 %v35, 128
    %v39 = vstv %s33
    %v40 = vadd.s32 %v39, %v38
    %v41 = vadd.s32 %v40, %v37
    %s42 = sld [smem:[#allocation2]]
    %s43 = sxor.u32 %s42, 2654435769
    %s44 = sxor.u32 %s43, 466688986
    %v45 = vstv %s42
    %v46 = vadd.s32 %v41, %v45
    %v47 = vadd.s32 %v46, 3279777354
    %v48 = vxor.u32 %v47, 2915653743
    %v49 = vadd.s32 %v47, %v48
    %v50 = vshll.u32 %v48, 15
    %v51 = vshrl.u32 %v48, 17
    %v52 = vor.u32 %v50, %v51
    %v53 = vxor.u32 %v52, %v49
    %v54 = vadd.s32 %v49, %v53
    %v55 = vshll.u32 %v53, 26
    %v56 = vshrl.u32 %v53, 6
    %v57 = vor.u32 %v55, %v56
    %v58 = vxor.u32 %v57, %v54
    %v59 = vadd.s32 %v54, %v58
    %v60 = vshll.u32 %v58, 6
    %v61 = vshrl.u32 %v58, 26
    %v62 = vor.u32 %v60, %v61
    %v63 = vxor.u32 %v62, %v59
    %v64 = vadd.s32 %v59, 2654435769
    %v65 = vstv %s44
    %v66 = vadd.s32 %v63, %v65
    %v67 = vadd.s32 %v66, 1
    %v68 = vadd.s32 %v64, %v67
    %v69 = vshll.u32 %v67, 17
    %v70 = vshrl.u32 %v67, 15
    %v71 = vor.u32 %v69, %v70
    %v72 = vxor.u32 %v71, %v68
    %v73 = vadd.s32 %v68, %v72
    %v74 = vshll.u32 %v72, 29
    %v75 = vshrl.u32 %v72, 3
    %v76 = vor.u32 %v74, %v75
    %v77 = vxor.u32 %v76, %v73
    %v78 = vadd.s32 %v73, %v77
    %v79 = vshll.u32 %v77, 16
    %v80 = vshrl.u32 %v77, 16
    %v81 = vor.u32 %v79, %v80
    %v82 = vxor.u32 %v81, %v78
    %v83 = vadd.s32 %v78, %v82
    %v84 = vshll.u32 %v82, 24
    %v85 = vshrl.u32 %v82, 8
    %v86 = vor.u32 %v84, %v85
    %v87 = vxor.u32 %v86, %v83
    %v88 = vadd.s32 %v83, %v65
    %v89 = vadd.s32 %v87, %v45
    %v90 = vadd.s32 %v89, 2
    %v91 = vadd.s32 %v88, %v90
    %v92 = vshll.u32 %v90, 13
    %v93 = vshrl.u32 %v90, 19
    %v94 = vor.u32 %v92, %v93
    %v95 = vxor.u32 %v94, %v91
    %v96 = vadd.s32 %v91, %v95
    %v97 = vshll.u32 %v95, 15
    %v98 = vshrl.u32 %v95, 17
    %v99 = vor.u32 %v97, %v98
    %v100 = vxor.u32 %v99, %v96
    %v101 = vadd.s32 %v96, %v100
    %v102 = vshll.u32 %v100, 26
    %v103 = vshrl.u32 %v100, 6
    %v104 = vor.u32 %v102, %v103
    %v105 = vxor.u32 %v104, %v101
    %v106 = vadd.s32 %v101, %v105
    %v107 = vshll.u32 %v105, 6
    %v108 = vshrl.u32 %v105, 26
    %v109 = vor.u32 %v107, %v108
    %v110 = vxor.u32 %v109, %v106
    %v111 = vadd.s32 %v106, %v45
    %v112 = vadd.s32 %v110, 2654435769
    %v113 = vadd.s32 %v112, 3
    %v114 = vshrl.u32 %v111, 8
    %v115 = vcvt.s32.f32 %v114
    %v116 = vadd.f32 %v115, 1.0
    %v117 = vmul.f32 %v116, 5.9604645e-08
    %v118 = vshrl.u32 %v113, 8
    %v119 = vcvt.s32.f32 %v118
    %v120 = vmul.f32 %v119, 5.9604645e-08
    %s121 = sld [smem:[#allocation3]]
    %v122 = vlog2.pop %v117
    %v123 = vmul.f32 %v122, 0.6931472
    %v124 = vmul.f32 %v123, -2.0
    %v125 = vrsqrt.pop %v124
    %v126 = vmul.f32 %v125, %v124
    %v127 = vmul.f32 %v126, %v125
    %v128 = vmul.f32 0.5, %v127
    %v129 = vsub.f32 1.5, %v128
    %v130 = vmul.f32 %v125, %v129
    %v131 = vmul.f32 %v124, %v130
    %vm132 = vcmp.eq.f32.partialorder %v124, inf
    %v133 = vsel %vm132, %v124, %v131
    %vm134 = vcmp.eq.f32.partialorder %v124, 0.0
    %v135 = vand.u32 %v124, 2147483648
    %v136 = vsel %vm134, %v135, %v133
    %v137 = vstv %s121
    %v138 = vmul.f32 %v136, %v137
    %v139 = vmul.f32 %v120, 6.2831855
    %v140 = vand.u32 2147483647, %v139
    %vm141 = vcmp.le.f32.partialorder %v140, 0.7853982
    %vm142 = vcmp.lt.s32.totalorder %v139, 0
    %v143 = vand.u32 %v139, 2139095040
    %v144 = vshrl.u32 %v143, 23
    %v145 = vsub.s32 %v144, 127
    %v146 = vand.u32 2147483647, %v139
    %v147 = vand.u32 %v146, 8388607
    %v148 = vor.u32 %v147, 8388608
    %v149 = vsub.s32 0, %v148
    %v150 = vadd.s32 %v145, 1
    %vm151 = vcmp.gt.s32.totalorder %v150, 0
    %v152 = vsel %vm151, %v150, 0
    %v153 = vshrl.u32 %v152, 5
    %v154 = vand.u32 %v152, 31
    %v155 = vsub.s32 32, %v154
    %v156 = vshrl.u32 683565275, %v155
    %v157 = vshll.u32 683565275, %v154
    %v158 = vshrl.u32 2475754826, %v155
    %v159 = vor.u32 %v157, %v158
    %v160 = vshll.u32 2475754826, %v154
    %v161 = vshrl.u32 2131351028, %v155
    %v162 = vor.u32 %v160, %v161
    %v163 = vshll.u32 2131351028, %v154
    %v164 = vshrl.u32 2102212464, %v155
    %v165 = vor.u32 %v163, %v164
    %v166 = vshll.u32 2102212464, %v154
    %v167 = vshrl.u32 920167782, %v155
    %v168 = vor.u32 %v166, %v167
    %v169 = vshll.u32 920167782, %v154
    %v170 = vshrl.u32 1326507024, %v155
    %v171 = vor.u32 %v169, %v170
    %vm172 = vcmp.lt.s32.totalorder %v153, 1
    %vm173 = vcmp.lt.s32.totalorder %v153, 2
    %vm174 = vcmp.lt.s32.totalorder %v153, 3
    %vm175 = vcmp.lt.s32.totalorder %v153, 4
    %v176 = vsel %vm172, %v156, %v159
    %v177 = vsel %vm175, %v165, 2102212464
    %v178 = vsel %vm174, %v162, %v177
    %v179 = vsel %vm173, %v176, %v178
    %v180 = vsel %vm172, %v159, %v162
    %v181 = vsel %vm175, %v168, 920167782
    %v182 = vsel %vm174, %v165, %v181
    %v183 = vsel %vm173, %v180, %v182
    %v184 = vsel %vm172, %v162, %v165
    %v185 = vsel %vm175, %v171, 1326507024
    %v186 = vsel %vm174, %v168, %v185
    %v187 = vsel %vm173, %v184, %v186
    %v188 = vshll.u32 %v148, 8
    %v189 = vand.u32 %v188, 65535
    %v190 = vshrl.u32 %v188, 16
    %v191 = vand.u32 %v187, 65535
    %v192 = vshrl.u32 %v187, 16
    %v193 = vmul.u32 %v189, %v191
    %v194 = vmul.u32 %v189, %v192
    %v195 = vmul.u32 %v190, %v191
    %v196 = vmul.u32 %v190, %v192
    %v197 = vshll.u32 %v194, 16
    %v198 = vshrl.u32 %v194, 16
    %v199 = vshll.u32 %v195, 16
    %v200 = vshrl.u32 %v195, 16
    %vm201 = vc.u32 %v193, %v197
    %v202 = vsel %vm201, 1, 0
    %v203 = vadd.s32 %v193, %v197
    %v204 = vadd.s32 %v196, %v202
    %vm205 = vc.u32 %v203, %v199
    %v206 = vsel %vm205, 1, 0
    %v207 = vadd.s32 %v203, %v199
    %v208 = vadd.s32 %v204, %v206
    %v209 = vadd.s32 %v208, %v198
    %v210 = vadd.s32 %v209, %v200
    %v211 = vand.u32 %v188, 65535
    %v212 = vshrl.u32 %v188, 16
    %v213 = vand.u32 %v183, 65535
    %v214 = vshrl.u32 %v183, 16
    %v215 = vmul.u32 %v211, %v213
    %v216 = vmul.u32 %v211, %v214
    %v217 = vmul.u32 %v212, %v213
    %v218 = vmul.u32 %v212, %v214
    %v219 = vshll.u32 %v216, 16
    %v220 = vshrl.u32 %v216, 16
    %v221 = vshll.u32 %v217, 16
    %v222 = vshrl.u32 %v217, 16
    %vm223 = vc.u32 %v215, %v219
    %v224 = vsel %vm223, 1, 0
    %v225 = vadd.s32 %v215, %v219
    %v226 = vadd.s32 %v218, %v224
    %vm227 = vc.u32 %v225, %v221
    %v228 = vsel %vm227, 1, 0
    %v229 = vadd.s32 %v225, %v221
    %v230 = vadd.s32 %v226, %v228
    %v231 = vadd.s32 %v230, %v220
    %v232 = vadd.s32 %v231, %v222
    %v233 = vmul.u32 %v188, %v179
    %v234 = vadd.s32 %v210, %v229
    %vm235 = vc.u32 %v210, %v229
    %v236 = vadd.s32 %v232, 1
    %v237 = vsel %vm235, %v236, %v232
    %v238 = vadd.s32 %v233, %v237
    %v239 = vadd.s32 %v238, 536870912
    %v240 = vshrl.u32 %v239, 30
    %v241 = vshll.u32 %v240, 30
    %v242 = vsub.s32 %v238, %v241
    %vm243 = vcmp.lt.s32.totalorder %v242, 0
    %v244 = vsub.s32 0, %v242
    %v245 = vsel %vm243, %v244, %v242
    %v246 = vclz %v245
    %v247 = vsub.s32 %v246, 2
    %vm248 = vcmp.gt.s32.totalorder 0, %v247
    %v249 = vsel %vm248, 0, %v247
    %v250 = vsub.s32 32, %v249
    %v251 = vshll.u32 %v242, %v249
    %v252 = vshrl.u32 %v234, %v250
    %v253 = vor.u32 %v251, %v252
    %v254 = vsub.s32 4294967266, %v249
    %v255 = vadd.s32 %v254, 127
    %v256 = vshll.u32 %v255, 23
    %v257 = vor.u32 4788187, %v256
    %v258 = vand.u32 2147483647, %v257
    %v260 = vcvt.s32.f32 %v253
    %v261 = vmul.f32 %v260, %v258
    %v262 = vxor.u32 %v261, 2147483648
    %v263 = vsel %vm142, %v262, %v261
    %v264 = vsub.s32 4, %v240
    %v265 = vsel %vm142, %v264, %v240
    %v266 = vsel %vm141, %v139, %v263
    %v267 = vsel %vm141, 0, %v265
    %v268 = vmul.f32 %v266, %v266
    %v269 = vmul.f32 %v268, -0.001358992
    %v270 = vadd.f32 %v269, 0.041655596
    %v271 = vmul.f32 %v268, %v270
    %v272 = vadd.f32 %v271, -0.4999988
    %v273 = vmul.f32 %v268, %v272
    %v274 = vadd.f32 1.0, %v273
    %v275 = vmul.f32 %v266, %v266
    %v276 = vmul.f32 %v275, -0.00019511016
    %v277 = vadd.f32 %v276, 0.008332121
    %v278 = vmul.f32 %v275, %v277
    %v279 = vadd.f32 %v278, -0.16666654
    %v280 = vmul.f32 %v275, %v279
    %v281 = vadd.f32 %v280, 1.0
    %v282 = vmul.f32 %v281, %v266
    %vm283 = vweird.f32 %v139
    %v284 = vand.u32 %v267, 3
    %vm285 = vcmp.lt.s32.totalorder %v284, 2
    %vm286 = vcmp.eq.s32.totalorder %v284, 0
    %v287 = vxor.u32 %v282, 2147483648
    %v288 = vsel %vm286, %v274, %v287
    %vm289 = vcmp.eq.s32.totalorder %v284, 2
    %v290 = vxor.u32 %v274, 2147483648
    %v291 = vsel %vm289, %v290, %v282
    %v292 = vsel %vm285, %v288, %v291
    %v293 = vsel %vm283, nan, %v292
    %v294 = vand.u32 %v113, 1
    %vm295 = vcmp.eq.s32.totalorder %v294, 0
    %v296 = vsel %vm295, 1.0, -1.0
    %v297 = vmul.f32 %v138, %v293
    %v298 = vmul.f32 %v138, %v296
    %v299 = vmul.f32 %v293, %v293
    %v300 = vsub.f32 1.0, %v299
    %v301 = vmax.f32 %v300, 0.0
    %v302 = vrsqrt.pop %v301
    %v303 = vmul.f32 %v302, %v301
    %v304 = vmul.f32 %v303, %v302
    %v305 = vmul.f32 0.5, %v304
    %v306 = vsub.f32 1.5, %v305
    %v307 = vmul.f32 %v302, %v306
    %v308 = vmul.f32 %v301, %v307
    %vm309 = vcmp.eq.f32.partialorder %v301, inf
    %v310 = vsel %vm309, %v301, %v308
    %vm311 = vcmp.eq.f32.partialorder %v301, 0.0
    %v312 = vand.u32 %v301, 2147483648
    %v313 = vsel %vm311, %v312, %v310
    %v314 = vmul.f32 %v298, %v313
    %v315 = vld [vmem:[#allocation4] sm:$0xff]
    %v316 = vadd.f32 %v315, %v297
    %317 = vst [vmem:[#allocation7] sm:$0xff] %v316
    %v318 = vld [vmem:[#allocation4 + $0x8] sm:$0xff]
    %v319 = vadd.f32 %v318, %v314
    %320 = vst [vmem:[#allocation7 + $0x8] sm:$0xff] %v319
    // Predicated region
    $region18: #{tpu_custom_call.1} parent=1 // pred_check
      _
    $region19: #{tpu_custom_call.1} parent=1 // pred_check_branch
      %322 = sbr.rel (0) target = $region21
    $region20: #{tpu_custom_call.1} parent=1 // pred_region
      %324 = vsyncadd [#allocation6], 0
      %s325 = sshll.u32 [#allocation7], 4
      %s326 = int_to_ptr.vmem [resolvable:$true] %s325
      %s327 = sshll.u32 %s3, 4
      %s328 = int_to_ptr.hbm [resolvable:$true] %s327
      %333 = dma.vmem_to_hbm [thread:$0]  %s326, 256, %s328, [#allocation6], 128, 128, 8
    $region21: #{tpu_custom_call.1} parent=1 // pred_fallthru
      _
    // Predicated region
    $region22: #{tpu_custom_call.1} parent=1 // pred_check
      _
    $region23: #{tpu_custom_call.1} parent=1 // pred_check_branch
      %335 = sbr.rel (0) target = $region25
    $region24: #{tpu_custom_call.1} parent=1 // pred_region
      %337 = dma.done [#allocation6], 256
    $region25: #{tpu_custom_call.1} parent=1 // pred_fallthru
      _
    %338 = vsyncpa [#allocation5], 1
    %339 = vsyncpa [#allocation6], 1

</llo_original>
